<compile_context>
chip_gen: v7x
topology: tpu7x:2x2x1
jax: 0.10.0
libtpu: 0.0.40
codegen_flags: <defaults>
</compile_context>

<pallas_src>
import jax
import jax.numpy as jnp
from jax.experimental import pallas as pl
from jax.experimental.pallas import tpu as pltpu

_LANES = 128
_MAX_ROWS_PER_TILE = 1024      # 1024 sublanes x 128 lanes = 128K batch elems / tile
_PALLAS_MIN_BATCH = 8192       # below this, plain XLA fusion beats a kernel launch


def _cdiv(a, b):
    return -(-a // b)


def _round_up(a, m):
    return _cdiv(a, m) * m


def _hand_type_loss_kernel(p_ref, g_ref, v_ref, loss_ref):
    # p_ref/g_ref: [C, Rt, 128]   v_ref/loss_ref: [Rt, 128]
    p = p_ref[...].astype(jnp.float32)     # probabilities (post-sigmoid upstream)
    g = g_ref[...].astype(jnp.float32)     # targets in [0, 1]
    v = v_ref[...].astype(jnp.float32)     # validity mask

    # PyTorch F.binary_cross_entropy clamps each log term at -100.
    log_p = jnp.maximum(jnp.log(p), -100.0)
    log_1mp = jnp.maximum(jnp.log1p(-p), -100.0)   # log1p avoids 1-p cancellation
    bce = -(g * log_p + (1.0 - g) * log_1mp)       # [C, Rt, 128], reduction='none'

    # Mean over the class dim (leading axis): full-vreg VALU adds, no XLU.
    num_classes = bce.shape[0]
    acc = bce[0]
    for c in range(1, num_classes):
        acc = acc + bce[c]
    loss_ref[...] = acc * jnp.float32(1.0 / num_classes) * v


def _hand_type_loss_jnp(hand_type_out, hand_type_gt, hand_type_valid):
    p = hand_type_out.astype(jnp.float32)
    g = hand_type_gt.astype(jnp.float32)
    v = hand_type_valid.astype(jnp.float32)
    log_p = jnp.maximum(jnp.log(p), -100.0)
    log_1mp = jnp.maximum(jnp.log1p(-p), -100.0)
    bce = -(g * log_p + (1.0 - g) * log_1mp)
    return bce.mean(axis=1) * v


def hand_type_loss(hand_type_out, hand_type_gt, hand_type_valid, *, force_kernel=False):
    """hand_type_out/gt: [B, C]; hand_type_valid: [B] -> loss: [B] float32."""
    B, C = hand_type_out.shape

    if not force_kernel and B < _PALLAS_MIN_BATCH:
        # Production shape for this head is tiny (B = batch size, C = 2);
        # the math is nanoseconds and XLA fuses it into neighboring work.
        return _hand_type_loss_jnp(hand_type_out, hand_type_gt, hand_type_valid)

    # ----- dense [C, rows, 128] layout with adaptive row tiling -----
    rows = _round_up(_cdiv(B, _LANES), 8)            # sublane rows, multiple of 8
    grid = _cdiv(rows, _MAX_ROWS_PER_TILE)
    rt = _round_up(_cdiv(rows, grid), 8)             # rows per tile, multiple of 8
    rows_pad = rt * grid
    b_pad = rows_pad * _LANES
    pad = b_pad - B

    # Layout plumbing in the wrapper (fuses / single copy in XLA).
    p_t = jnp.transpose(hand_type_out)               # [C, B]
    g_t = jnp.transpose(hand_type_gt)                # [C, B]
    v_t = hand_type_valid                            # [B]
    if pad:
        # Pad p with 0.5 so log terms stay finite; padded lanes get valid=0
        # and are sliced off afterwards anyway.
        p_t = jnp.pad(p_t, ((0, 0), (0, pad)), constant_values=0.5)
        g_t = jnp.pad(g_t, ((0, 0), (0, pad)))
        v_t = jnp.pad(v_t, (0, pad))
    p3 = p_t.reshape(C, rows_pad, _LANES)
    g3 = g_t.reshape(C, rows_pad, _LANES)
    v2 = v_t.reshape(rows_pad, _LANES)

    # Per grid step (f32): 2 * C*rt*128*4 + 2 * rt*128*4 bytes  (~3 MiB at
    # rt=1024, C=2) -> ~6 MiB double-buffered: fits v5e's 16 MiB scoped VMEM
    # and v7x's 32 MiB scoped default, no vmem_limit override needed.
    loss2d = pl.pallas_call(
        _hand_type_loss_kernel,
        out_shape=jax.ShapeDtypeStruct((rows_pad, _LANES), jnp.float32),
        grid=(grid,),
        in_specs=[
            pl.BlockSpec((C, rt, _LANES), lambda i: (0, i, 0)),
            pl.BlockSpec((C, rt, _LANES), lambda i: (0, i, 0)),
            pl.BlockSpec((rt, _LANES), lambda i: (i, 0)),
        ],
        out_specs=pl.BlockSpec((rt, _LANES), lambda i: (i, 0)),
        compiler_params=pltpu.CompilerParams(
            dimension_semantics=("parallel",)),   # megacore / v7x 2-TC sharding
    )(p3, g3, v2)

    return loss2d.reshape(b_pad)[:B]


def _reference(hand_type_out, hand_type_gt, hand_type_valid):
    p = hand_type_out.astype(jnp.float32)
    g = hand_type_gt.astype(jnp.float32)
    v = hand_type_valid.astype(jnp.float32)
    log_p = jnp.maximum(jnp.log(p), -100.0)
    log_1mp = jnp.maximum(jnp.log(1.0 - p), -100.0)
    bce = -(g * log_p + (1.0 - g) * log_1mp)
    return bce.mean(axis=1) * v


if __name__ == "__main__":
    key = jax.random.PRNGKey(0)

    # Case 1: typical HandType head shape (B=8, C=2) forced through the
    # Pallas kernel path (pads batch up to one dense [2, 8, 128] tile).
    k1, k2, k3, k4, k5, k6 = jax.random.split(key, 6)
    B, C = 8, 2
    hand_type_out = jax.nn.sigmoid(jax.random.normal(k1, (B, C), dtype=jnp.float32))
    hand_type_gt = jax.random.bernoulli(k2, 0.5, (B, C)).astype(jnp.float32)
    hand_type_valid = jax.random.bernoulli(k3, 0.7, (B,)).astype(jnp.float32)

    loss = hand_type_loss(hand_type_out, hand_type_gt, hand_type_valid, force_kernel=True)
    loss = jax.block_until_ready(loss)
    ref = _reference(hand_type_out, hand_type_gt, hand_type_valid)
    assert loss.shape == (B,)
    assert jnp.allclose(loss, ref, atol=1e-5, rtol=1e-5), (loss, ref)

    # Case 2: non-multiple batch (exercises padding) through the kernel.
    B2 = 300
    out2 = jax.nn.sigmoid(jax.random.normal(k4, (B2, C), dtype=jnp.float32))
    gt2 = jax.random.bernoulli(k5, 0.5, (B2, C)).astype(jnp.float32)
    val2 = jax.random.bernoulli(k6, 0.7, (B2,)).astype(jnp.float32)
    loss2 = jax.block_until_ready(
        hand_type_loss(out2, gt2, val2, force_kernel=True))
    ref2 = _reference(out2, gt2, val2)
    assert loss2.shape == (B2,)
    assert jnp.allclose(loss2, ref2, atol=1e-5, rtol=1e-5), (loss2, ref2)

    # Case 3: default dispatch at tiny batch (fused jnp fast path).
    loss3 = jax.block_until_ready(
        hand_type_loss(hand_type_out, hand_type_gt, hand_type_valid))
    assert jnp.allclose(loss3, ref, atol=1e-5, rtol=1e-5), (loss3, ref)

    print("KERNEL_OK")
</pallas_src>

<mosaic_0001>
module attributes {stable_mosaic.version = 11 : i64} {
  func.func @_hand_type_loss_kernel(%arg0: i32, %arg1: memref<2x8x128xf32, #tpu.memory_space<vmem>>, %arg2: memref<2x8x128xf32, #tpu.memory_space<vmem>>, %arg3: memref<8x128xf32, #tpu.memory_space<vmem>>, %arg4: memref<8x128xf32, #tpu.memory_space<vmem>>) attributes {dimension_semantics = [#tpu.dimension_semantics<parallel>], iteration_bounds = array<i64: 1>, scalar_prefetch = 0 : i64, scratch_operands = 0 : i64, tpu.core_type = #tpu.core_type<tc>, window_params = [{transform_indices = @transform_0, window_bounds = array<i64: 2, 8, 128>}, {transform_indices = @transform_1, window_bounds = array<i64: 2, 8, 128>}, {transform_indices = @transform_2, window_bounds = array<i64: 8, 128>}, {transform_indices = @transform_3, window_bounds = array<i64: 8, 128>}]} {
    %c0 = arith.constant 0 : index
    %c0_0 = arith.constant 0 : index
    %c0_1 = arith.constant 0 : index
    %0 = vector.load %arg1[%c0, %c0_0, %c0_1] : memref<2x8x128xf32, #tpu.memory_space<vmem>>, vector<2x8x128xf32>
    %c0_2 = arith.constant 0 : index
    %c0_3 = arith.constant 0 : index
    %c0_4 = arith.constant 0 : index
    %1 = vector.load %arg2[%c0_2, %c0_3, %c0_4] : memref<2x8x128xf32, #tpu.memory_space<vmem>>, vector<2x8x128xf32>
    %c0_5 = arith.constant 0 : index
    %c0_6 = arith.constant 0 : index
    %2 = vector.load %arg3[%c0_5, %c0_6] : memref<8x128xf32, #tpu.memory_space<vmem>>, vector<8x128xf32>
    %3 = math.log %0 : vector<2x8x128xf32>
    %cst = arith.constant -1.000000e+02 : f32
    %4 = vector.broadcast %cst : f32 to vector<2x8x128xf32>
    %5 = arith.maximumf %3, %4 : vector<2x8x128xf32>
    %cst_7 = arith.constant 0.000000e+00 : f32
    %6 = vector.broadcast %cst_7 : f32 to vector<2x8x128xf32>
    %7 = arith.subf %6, %0 : vector<2x8x128xf32>
    %8 = math.log1p %7 : vector<2x8x128xf32>
    %cst_8 = arith.constant -1.000000e+02 : f32
    %9 = vector.broadcast %cst_8 : f32 to vector<2x8x128xf32>
    %10 = arith.maximumf %8, %9 : vector<2x8x128xf32>
    %11 = arith.mulf %1, %5 : vector<2x8x128xf32>
    %cst_9 = arith.constant 1.000000e+00 : f32
    %12 = vector.broadcast %cst_9 : f32 to vector<2x8x128xf32>
    %13 = arith.subf %12, %1 : vector<2x8x128xf32>
    %14 = arith.mulf %13, %10 : vector<2x8x128xf32>
    %15 = arith.addf %11, %14 : vector<2x8x128xf32>
    %cst_10 = arith.constant 0.000000e+00 : f32
    %16 = vector.broadcast %cst_10 : f32 to vector<2x8x128xf32>
    %17 = arith.subf %16, %15 : vector<2x8x128xf32>
    %18 = vector.extract_strided_slice %17 {offsets = [0, 0, 0], sizes = [1, 8, 128], strides = [1, 1, 1]} : vector<2x8x128xf32> to vector<1x8x128xf32>
    %19 = vector.shape_cast %18 : vector<1x8x128xf32> to vector<8x128xf32>
    %20 = vector.extract_strided_slice %17 {offsets = [1, 0, 0], sizes = [1, 8, 128], strides = [1, 1, 1]} : vector<2x8x128xf32> to vector<1x8x128xf32>
    %21 = vector.shape_cast %20 : vector<1x8x128xf32> to vector<8x128xf32>
    %22 = arith.addf %19, %21 : vector<8x128xf32>
    %cst_11 = arith.constant 5.000000e-01 : f32
    %23 = vector.broadcast %cst_11 : f32 to vector<8x128xf32>
    %24 = arith.mulf %22, %23 : vector<8x128xf32>
    %25 = arith.mulf %24, %2 : vector<8x128xf32>
    %c0_12 = arith.constant 0 : index
    %c0_13 = arith.constant 0 : index
    %26 = vector.load %arg4[%c0_12, %c0_13] : memref<8x128xf32, #tpu.memory_space<vmem>>, vector<8x128xf32>
    tpu.vector_store %arg4[%c0_12, %c0_13], %25 {strides = array<i32>} : memref<8x128xf32, #tpu.memory_space<vmem>>, vector<8x128xf32>,
    return
  }
  func.func @transform_0(%arg0: i32) -> (i32, i32, i32) {
    %c0_i32 = arith.constant 0 : i32
    %c0_i32_0 = arith.constant 0 : i32
    %c0_i32_1 = arith.constant 0 : i32
    return %c0_i32, %arg0, %c0_i32_0 : i32, i32, i32
  }
  func.func @transform_1(%arg0: i32) -> (i32, i32, i32) {
    %c0_i32 = arith.constant 0 : i32
    %c0_i32_0 = arith.constant 0 : i32
    %c0_i32_1 = arith.constant 0 : i32
    return %c0_i32, %arg0, %c0_i32_0 : i32, i32, i32
  }
  func.func @transform_2(%arg0: i32) -> (i32, i32) {
    %c0_i32 = arith.constant 0 : i32
    %c0_i32_0 = arith.constant 0 : i32
    return %arg0, %c0_i32 : i32, i32
  }
  func.func @transform_3(%arg0: i32) -> (i32, i32) {
    %c0_i32 = arith.constant 0 : i32
    %c0_i32_0 = arith.constant 0 : i32
    return %arg0, %c0_i32 : i32, i32
  }
}

</mosaic_0001>

<llo_original>
// kernel: tpu_custom_call.1
$region0: #{tpu_custom_call.1}
  #allocation0 [shape = 'u32[]', space=smem, size = 0x4, offset = 0x4, fixed_abs, tag = 'smem constant byte address 0x4 - core index']
  #allocation1 [shape = 'u32[144,128]{1,0:T(1,128)}', space=vmem, size = 0x12000, scoped, tag = 'internal scratch']
  %s0 = inlined_call_operand.hbm [shape: f32[2,8,128], index: 0, kind: input, shape index: {}]
  %s1 = inlined_call_operand.hbm [shape: f32[2,8,128], index: 1, kind: input, shape index: {}]
  %s2 = inlined_call_operand.hbm [shape: f32[8,128], index: 2, kind: input, shape index: {}]
  %s3 = inlined_call_operand.hbm [shape: f32[8,128], index: 3, kind: output, shape index: {}]
  %s4 = sld [smem:[#allocation0]]
  $region34: #{tpu_custom_call.1} parent=0
    _
  %s6 = ssub.s32 1, %s4
  %s7 = scalar_select 0, %s6, %s4
  $region1: #{tpu_custom_call.1} parent=0
    #allocation2 [shape = 'u8[8192]{0}', space=vmem, size = 0x2000, scoped, tag = 'input window, operand 0, single buffered']
    #allocation3 [shape = 's32[1]{0}', space=sflag, size = 0x4, scoped, tag = 'scoped memory for tpu_custom_call.1']
    #allocation4 [shape = 's32[1]{0}', space=sflag, size = 0x4, scoped, tag = 'scoped memory for tpu_custom_call.1']
    #allocation5 [shape = 'u8[8192]{0}', space=vmem, size = 0x2000, scoped, tag = 'input window, operand 1, single buffered']
    #allocation6 [shape = 's32[1]{0}', space=sflag, size = 0x4, scoped, tag = 'scoped memory for tpu_custom_call.1']
    #allocation7 [shape = 'u8[4096]{0}', space=vmem, size = 0x1000, scoped, tag = 'input window, operand 2, single buffered']
    #allocation8 [shape = 'u8[4096]{0}', space=vmem, size = 0x1000, scoped, tag = 'output window, operand 0, single buffered']
    %8 = vsyncpa [#allocation3], 0
    %9 = vsyncpa [#allocation6], 0
    %10 = vsyncpa [#allocation4], 0
    // Predicated region
    $region2: #{tpu_custom_call.1} parent=1 // pred_check
      _
    $region3: #{tpu_custom_call.1} parent=1 // pred_check_branch
      %12 = sbr.rel (0) target = $region5
    $region4: #{tpu_custom_call.1} parent=1 // pred_region
      %s14 = ssub.s32 256, 256
      %15 = vsyncadd [#allocation3], %s14
      %s16 = sshll.u32 [#allocation2], 4
      %s17 = int_to_ptr.vmem [resolvable:$true] %s16
      %22 = dma.hbm_to_vmem [thread:$0]  %s0, 256, %s17, [#allocation3], 128, 128, 8
    $region5: #{tpu_custom_call.1} parent=1 // pred_fallthru
      _
    // Predicated region
    $region6: #{tpu_custom_call.1} parent=1 // pred_check
      _
    $region7: #{tpu_custom_call.1} parent=1 // pred_check_branch
      %24 = sbr.rel (0) target = $region9
    $region8: #{tpu_custom_call.1} parent=1 // pred_region
      %s26 = ssub.s32 256, 256
      %27 = vsyncadd [#allocation6], %s26
      %s28 = sshll.u32 [#allocation5], 4
      %s29 = int_to_ptr.vmem [resolvable:$true] %s28
      %34 = dma.hbm_to_vmem [thread:$0]  %s1, 256, %s29, [#allocation6], 128, 128, 8
    $region9: #{tpu_custom_call.1} parent=1 // pred_fallthru
      _
    // Predicated region
    $region10: #{tpu_custom_call.1} parent=1 // pred_check
      _
    $region11: #{tpu_custom_call.1} parent=1 // pred_check_branch
      %36 = sbr.rel (0) target = $region13
    $region12: #{tpu_custom_call.1} parent=1 // pred_region
      %s38 = ssub.s32 128, 128
      %39 = vsyncadd [#allocation6], %s38
      %s41 = sshll.u32 [#allocation7], 4
      %s42 = int_to_ptr.vmem [resolvable:$true] %s41
      %44 = dma.hbm_to_vmem [thread:$0]  %s2, 128, %s42, [#allocation6]
    $region13: #{tpu_custom_call.1} parent=1 // pred_fallthru
      _
    // Predicated region
    $region14: #{tpu_custom_call.1} parent=1 // pred_check
      _
    $region15: #{tpu_custom_call.1} parent=1 // pred_check_branch
      %46 = sbr.rel (0) target = $region17
    $region16: #{tpu_custom_call.1} parent=1 // pred_region
      %47 = dma.done [#allocation3], 256
    $region17: #{tpu_custom_call.1} parent=1 // pred_fallthru
      _
    // Predicated region
    $region18: #{tpu_custom_call.1} parent=1 // pred_check
      _
    $region19: #{tpu_custom_call.1} parent=1 // pred_check_branch
      %49 = sbr.rel (0) target = $region21
    $region20: #{tpu_custom_call.1} parent=1 // pred_region
      %50 = dma.done [#allocation6], 256
    $region21: #{tpu_custom_call.1} parent=1 // pred_fallthru
      _
    // Predicated region
    $region22: #{tpu_custom_call.1} parent=1 // pred_check
      _
    $region23: #{tpu_custom_call.1} parent=1 // pred_check_branch
      %52 = sbr.rel (0) target = $region25
    $region24: #{tpu_custom_call.1} parent=1 // pred_region
      %53 = dma.done [#allocation6], 128
    $region25: #{tpu_custom_call.1} parent=1 // pred_fallthru
      _
    %v54 = vld [vmem:[#allocation2] sm:$0xff]
    %v55 = vld [vmem:[#allocation2 + $0x8] sm:$0xff]
    %v56 = vld [vmem:[#allocation5] sm:$0xff]
    %v57 = vld [vmem:[#allocation5 + $0x8] sm:$0xff]
    %v58 = vld [vmem:[#allocation7] sm:$0xff]
    %v59 = vlog2.pop %v54
    %v60 = vmul.f32 %v59, 0.6931472
    %v61 = vlog2.pop %v55
    %v62 = vmul.f32 %v61, 0.6931472
    %v63 = vmax.f32 %v60, -100.0
    %v64 = vmax.f32 %v62, -100.0
    %v65 = vsub.f32 0.0, %v54
    %v66 = vsub.f32 0.0, %v55
    %v67 = vadd.f32 %v65, 1.0
    %v68 = vlog2.pop %v67
    %v69 = vmul.f32 %v68, 0.6931472
    %v70 = vmul.f32 -0.5, %v65
    %v71 = vadd.f32 %v70, 1.0
    %v72 = vmul.f32 %v71, %v65
    %v73 = vand.u32 2147483647, %v65
    %vm74 = vcmp.lt.f32.partialorder %v73, 0.0004427343
    %v75 = vsel %vm74, %v72, %v69
    %v76 = vadd.f32 %v66, 1.0
    %v77 = vlog2.pop %v76
    %v78 = vmul.f32 %v77, 0.6931472
    %v79 = vmul.f32 -0.5, %v66
    %v80 = vadd.f32 %v79, 1.0
    %v81 = vmul.f32 %v80, %v66
    %v82 = vand.u32 2147483647, %v66
    %vm83 = vcmp.lt.f32.partialorder %v82, 0.0004427343
    %v84 = vsel %vm83, %v81, %v78
    %v85 = vmax.f32 %v75, -100.0
    %v86 = vmax.f32 %v84, -100.0
    %v87 = vmul.f32 %v56, %v63
    %v88 = vmul.f32 %v57, %v64
    %v89 = vsub.f32 1.0, %v56
    %v90 = vsub.f32 1.0, %v57
    %v91 = vmul.f32 %v89, %v85
    %v92 = vmul.f32 %v90, %v86
    %v93 = vadd.f32 %v87, %v91
    %v94 = vadd.f32 %v88, %v92
    %v95 = vsub.f32 0.0, %v93
    %v96 = vsub.f32 0.0, %v94
    %v97 = vadd.f32 %v95, %v96
    %v98 = vmul.f32 %v97, 0.5
    %v99 = vmul.f32 %v98, %v58
    %100 = vst [vmem:[#allocation8] sm:$0xff] %v99
    // Predicated region
    $region26: #{tpu_custom_call.1} parent=1 // pred_check
      _
    $region27: #{tpu_custom_call.1} parent=1 // pred_check_branch
      %102 = sbr.rel (0) target = $region29
    $region28: #{tpu_custom_call.1} parent=1 // pred_region
      %s104 = ssub.s32 128, 128
      %105 = vsyncadd [#allocation4], %s104
      %s107 = sshll.u32 [#allocation8], 4
      %s108 = int_to_ptr.vmem [resolvable:$true] %s107
      %110 = dma.vmem_to_hbm [thread:$0]  %s108, 128, %s3, [#allocation4]
    $region29: #{tpu_custom_call.1} parent=1 // pred_fallthru
      _
    // Predicated region
    $region30: #{tpu_custom_call.1} parent=1 // pred_check
      _
    $region31: #{tpu_custom_call.1} parent=1 // pred_check_branch
      %112 = sbr.rel (0) target = $region33
    $region32: #{tpu_custom_call.1} parent=1 // pred_region
      %113 = dma.done [#allocation4], 128
    $region33: #{tpu_custom_call.1} parent=1 // pred_fallthru
      _
    %114 = vsyncpa [#allocation3], 1
    %115 = vsyncpa [#allocation6], 1
    %116 = vsyncpa [#allocation4], 1

</llo_original>
